<compile_context>
chip_gen: v7x
topology: tpu7x:2x2x1
jax: 0.10.0
libtpu: 0.0.40
codegen_flags: <defaults>
</compile_context>

<pallas_src>
import functools

import jax
import jax.numpy as jnp
from jax.experimental import pallas as pl
from jax.experimental.pallas import tpu as pltpu

LANES = 128          # vreg lane width — params and output are padded to this lane count
NEG_BIG = -1e30      # pad-lane bias: exp underflows to 0 in f32 -> exact 0 probability


def _align8(n):
    return ((n + 7) // 8) * 8


def vnet_kernel(x_ref, p_ref, o_ref, *, layout):
    """x_ref: (B, in_dim) f32.  p_ref: (rows, 128) packed params.  o_ref: (B, 128) f32."""
    in_dim = layout["in_dim"]
    r_w1, r_b1 = layout["r_w1"], layout["r_b1"]
    r_w2, r_b2 = layout["r_w2"], layout["r_b2"]
    r_w3, r_b3 = layout["r_w3"], layout["r_b3"]

    x = x_ref[...]                                    # (B, in_dim)

    # ---- fc1 + relu : K = in_dim (4) is tiny -> VPU broadcast-FMA chain (no MXU pass),
    # bias folded into the accumulator init.  Pad lanes (>= hidden) stay exactly 0.
    w1 = p_ref[r_w1:r_w1 + in_dim, :]                 # (in_dim, 128)
    acc1 = x[:, 0:1] * w1[0:1, :] + p_ref[r_b1:r_b1 + 1, :]
    for k in range(1, in_dim):
        acc1 = acc1 + x[:, k:k + 1] * w1[k:k + 1, :]
    h1 = jnp.maximum(acc1, 0.0)                       # (B, 128), pad lanes exactly 0

    # ---- fc2 + relu : one MXU pass on the 128-lane-padded weight block.
    h2 = jnp.dot(h1, p_ref[r_w2:r_w2 + LANES, :],
                 preferred_element_type=jnp.float32) + p_ref[r_b2:r_b2 + 1, :]
    h2 = jnp.maximum(h2, 0.0)                         # (B, 128), pad lanes exactly 0

    # ---- fc3 : one MXU pass; pad columns have zero weight + NEG_BIG bias -> prob == 0.
    logits = jnp.dot(h2, p_ref[r_w3:r_w3 + LANES, :],
                     preferred_element_type=jnp.float32) + p_ref[r_b3:r_b3 + 1, :]

    # softmax over the feature (lane) axis — matches F.softmax dim=1 for 2D input.
    m = jnp.max(logits, axis=-1, keepdims=True)
    e = jnp.exp(logits - m)
    probs = e * pl.reciprocal(jnp.sum(e, axis=-1, keepdims=True), approx=False)

    o_ref[...] = probs.astype(o_ref.dtype)            # dense (B, 128) unmasked store


def pack_vnet_params(params, input_dim, hidden_dim, output_dim):
    """Pack all six parameter tensors into ONE lane-dense (rows, 128) f32 slab at init time.

    Row layout (every section starts on an 8-sublane boundary):
        w1 (in_dim rows) | b1 (1) | w2 (128 rows) | b2 (1) | w3 (128 rows) | b3 (1)
    Weight / bias pad entries are 0 except b3's pad lanes, which are NEG_BIG so that the
    in-kernel softmax assigns them exactly zero probability.
    """
    assert input_dim <= LANES and hidden_dim <= LANES and output_dim <= LANES
    r_w1 = 0
    r_b1 = _align8(r_w1 + input_dim)
    r_w2 = _align8(r_b1 + 1)
    r_b2 = _align8(r_w2 + LANES)
    r_w3 = _align8(r_b2 + 1)
    r_b3 = _align8(r_w3 + LANES)
    n_rows = _align8(r_b3 + 1)

    slab = jnp.zeros((n_rows, LANES), jnp.float32)
    slab = slab.at[r_w1:r_w1 + input_dim, :hidden_dim].set(params["w1"])
    slab = slab.at[r_b1, :hidden_dim].set(params["b1"])
    slab = slab.at[r_w2:r_w2 + hidden_dim, :hidden_dim].set(params["w2"])
    slab = slab.at[r_b2, :hidden_dim].set(params["b2"])
    slab = slab.at[r_w3:r_w3 + hidden_dim, :output_dim].set(params["w3"])
    b3_row = jnp.full((LANES,), NEG_BIG, jnp.float32).at[:output_dim].set(params["b3"])
    slab = slab.at[r_b3, :].set(b3_row)

    layout = dict(in_dim=input_dim, hidden=hidden_dim, out_dim=output_dim,
                  r_w1=r_w1, r_b1=r_b1, r_w2=r_w2, r_b2=r_b2, r_w3=r_w3, r_b3=r_b3)
    return jax.device_put(slab), layout


def make_vnet_forward(layout):
    """Returns a jitted forward(x, packed_params) -> (B, out_dim) probabilities."""
    kernel = functools.partial(vnet_kernel, layout=layout)
    out_dim = layout["out_dim"]
    vmem = lambda: pl.BlockSpec(memory_space=pltpu.MemorySpace.VMEM)

    @jax.jit
    def forward(x, packed_params):
        B = x.shape[0]
        out_padded = pl.pallas_call(
            kernel,
            out_shape=jax.ShapeDtypeStruct((B, LANES), jnp.float32),
            in_specs=[vmem(), vmem()],    # gridless: whole arrays, VMEM-resident, 2 DMAs
            out_specs=vmem(),
        )(x, packed_params)
        return out_padded[:, :out_dim]    # pad lanes hold exact zeros; slice fuses under jit

    return forward


def init_vnet_params(key, input_dim, output_dim, hidden_dim):
    """Deterministic init mimicking nn.Linear's U(-1/sqrt(fan_in), 1/sqrt(fan_in)).
    Weights are stored transposed: (in_features, out_features); biases are 1-D."""
    def linear(key, fan_in, fan_out):
        kw, kb = jax.random.split(key)
        bound = 1.0 / jnp.sqrt(jnp.float32(fan_in))
        w = jax.random.uniform(kw, (fan_in, fan_out), jnp.float32, -bound, bound)
        b = jax.random.uniform(kb, (fan_out,), jnp.float32, -bound, bound)
        return w, b

    k1, k2, k3 = jax.random.split(key, 3)
    w1, b1 = linear(k1, input_dim, hidden_dim)
    w2, b2 = linear(k2, hidden_dim, hidden_dim)
    w3, b3 = linear(k3, hidden_dim, output_dim)
    return {"w1": w1, "b1": b1, "w2": w2, "b2": b2, "w3": w3, "b3": b3}


def vnet_ref(x, p):
    h1 = jax.nn.relu(x @ p["w1"] + p["b1"])
    h2 = jax.nn.relu(h1 @ p["w2"] + p["b2"])
    return jax.nn.softmax(h2 @ p["w3"] + p["b3"], axis=-1)


if __name__ == "__main__":
    key = jax.random.PRNGKey(0)
    k_param, k_x = jax.random.split(key)

    batch, input_dim, hidden_dim, output_dim = 8, 4, 32, 2
    params = init_vnet_params(k_param, input_dim, output_dim, hidden_dim)

    # Padding / packing hoisted out of the per-call path: done once here.
    packed, layout = pack_vnet_params(params, input_dim, hidden_dim, output_dim)
    forward = make_vnet_forward(layout)

    x = jax.random.normal(k_x, (batch, input_dim), jnp.float32)

    out = jax.block_until_ready(forward(x, packed))

    ref = vnet_ref(x, params)
    assert out.shape == (batch, output_dim)
    assert jnp.allclose(out, ref, atol=1e-5, rtol=1e-5)
    assert jnp.allclose(jnp.sum(out, axis=-1), 1.0, atol=1e-5)

    print("KERNEL_OK")
</pallas_src>

<mosaic_0001>
module attributes {stable_mosaic.version = 11 : i64} {
  func.func @vnet_kernel(%arg0: memref<8x4xf32, #tpu.memory_space<vmem>>, %arg1: memref<288x128xf32, #tpu.memory_space<vmem>>, %arg2: memref<8x128xf32, #tpu.memory_space<vmem>>) attributes {dimension_semantics = [], scalar_prefetch = 0 : i64, scratch_operands = 0 : i64, tpu.core_type = #tpu.core_type<tc>} {
    %c0 = arith.constant 0 : index
    %c0_0 = arith.constant 0 : index
    %0 = vector.load %arg0[%c0, %c0_0] : memref<8x4xf32, #tpu.memory_space<vmem>>, vector<8x4xf32>
    %c0_1 = arith.constant 0 : index
    %c0_2 = arith.constant 0 : index
    %1 = vector.load %arg1[%c0_1, %c0_2] : memref<288x128xf32, #tpu.memory_space<vmem>>, vector<4x128xf32>
    %2 = vector.extract_strided_slice %0 {offsets = [0, 0], sizes = [8, 1], strides = [1, 1]} : vector<8x4xf32> to vector<8x1xf32>
    %3 = vector.extract_strided_slice %1 {offsets = [0, 0], sizes = [1, 128], strides = [1, 1]} : vector<4x128xf32> to vector<1x128xf32>
    %4 = vector.broadcast %2 : vector<8x1xf32> to vector<8x128xf32>
    %5 = vector.broadcast %3 : vector<1x128xf32> to vector<8x128xf32>
    %6 = arith.mulf %4, %5 : vector<8x128xf32>
    %c8 = arith.constant 8 : index
    %c0_3 = arith.constant 0 : index
    %7 = vector.load %arg1[%c8, %c0_3] : memref<288x128xf32, #tpu.memory_space<vmem>>, vector<1x128xf32>
    %8 = vector.broadcast %7 : vector<1x128xf32> to vector<8x128xf32>
    %9 = arith.addf %6, %8 : vector<8x128xf32>
    %10 = vector.extract_strided_slice %0 {offsets = [0, 1], sizes = [8, 1], strides = [1, 1]} : vector<8x4xf32> to vector<8x1xf32>
    %11 = vector.extract_strided_slice %1 {offsets = [1, 0], sizes = [1, 128], strides = [1, 1]} : vector<4x128xf32> to vector<1x128xf32>
    %12 = vector.broadcast %10 : vector<8x1xf32> to vector<8x128xf32>
    %13 = vector.broadcast %11 : vector<1x128xf32> to vector<8x128xf32>
    %14 = arith.mulf %12, %13 : vector<8x128xf32>
    %15 = arith.addf %9, %14 : vector<8x128xf32>
    %16 = vector.extract_strided_slice %0 {offsets = [0, 2], sizes = [8, 1], strides = [1, 1]} : vector<8x4xf32> to vector<8x1xf32>
    %17 = vector.extract_strided_slice %1 {offsets = [2, 0], sizes = [1, 128], strides = [1, 1]} : vector<4x128xf32> to vector<1x128xf32>
    %18 = vector.broadcast %16 : vector<8x1xf32> to vector<8x128xf32>
    %19 = vector.broadcast %17 : vector<1x128xf32> to vector<8x128xf32>
    %20 = arith.mulf %18, %19 : vector<8x128xf32>
    %21 = arith.addf %15, %20 : vector<8x128xf32>
    %22 = vector.extract_strided_slice %0 {offsets = [0, 3], sizes = [8, 1], strides = [1, 1]} : vector<8x4xf32> to vector<8x1xf32>
    %23 = vector.extract_strided_slice %1 {offsets = [3, 0], sizes = [1, 128], strides = [1, 1]} : vector<4x128xf32> to vector<1x128xf32>
    %24 = vector.broadcast %22 : vector<8x1xf32> to vector<8x128xf32>
    %25 = vector.broadcast %23 : vector<1x128xf32> to vector<8x128xf32>
    %26 = arith.mulf %24, %25 : vector<8x128xf32>
    %27 = arith.addf %21, %26 : vector<8x128xf32>
    %cst = arith.constant 0.000000e+00 : f32
    %28 = vector.broadcast %cst : f32 to vector<8x128xf32>
    %29 = arith.maximumf %27, %28 : vector<8x128xf32>
    %c16 = arith.constant 16 : index
    %c0_4 = arith.constant 0 : index
    %30 = vector.load %arg1[%c16, %c0_4] : memref<288x128xf32, #tpu.memory_space<vmem>>, vector<128x128xf32>
    %cst_5 = arith.constant dense<0.000000e+00> : vector<8x128xf32>
    %31 = tpu.matmul %29, %30, %cst_5 {dimension_numbers = #tpu.dot_dimension_numbers<[1], [0], [0], [1], [0, 0, 1, 1], [], []>} : vector<8x128xf32>, vector<128x128xf32>, vector<8x128xf32> -> vector<8x128xf32>
    %c144 = arith.constant 144 : index
    %c0_6 = arith.constant 0 : index
    %32 = vector.load %arg1[%c144, %c0_6] : memref<288x128xf32, #tpu.memory_space<vmem>>, vector<1x128xf32>
    %33 = vector.broadcast %32 : vector<1x128xf32> to vector<8x128xf32>
    %34 = arith.addf %31, %33 : vector<8x128xf32>
    %cst_7 = arith.constant 0.000000e+00 : f32
    %35 = vector.broadcast %cst_7 : f32 to vector<8x128xf32>
    %36 = arith.maximumf %34, %35 : vector<8x128xf32>
    %c152 = arith.constant 152 : index
    %c0_8 = arith.constant 0 : index
    %37 = vector.load %arg1[%c152, %c0_8] : memref<288x128xf32, #tpu.memory_space<vmem>>, vector<128x128xf32>
    %cst_9 = arith.constant dense<0.000000e+00> : vector<8x128xf32>
    %38 = tpu.matmul %36, %37, %cst_9 {dimension_numbers = #tpu.dot_dimension_numbers<[1], [0], [0], [1], [0, 0, 1, 1], [], []>} : vector<8x128xf32>, vector<128x128xf32>, vector<8x128xf32> -> vector<8x128xf32>
    %c280 = arith.constant 280 : index
    %c0_10 = arith.constant 0 : index
    %39 = vector.load %arg1[%c280, %c0_10] : memref<288x128xf32, #tpu.memory_space<vmem>>, vector<1x128xf32>
    %40 = vector.broadcast %39 : vector<1x128xf32> to vector<8x128xf32>
    %41 = arith.addf %38, %40 : vector<8x128xf32>
    %cst_11 = arith.constant dense<0xFF800000> : vector<8xf32>
    %42 = vector.multi_reduction <maximumf>, %41, %cst_11 [1] : vector<8x128xf32> to vector<8xf32>
    %43 = vector.shape_cast %42 : vector<8xf32> to vector<8x1xf32>
    %44 = vector.broadcast %43 : vector<8x1xf32> to vector<8x128xf32>
    %45 = arith.subf %41, %44 : vector<8x128xf32>
    %46 = math.exp %45 : vector<8x128xf32>
    %cst_12 = arith.constant dense<0.000000e+00> : vector<8xf32>
    %47 = vector.multi_reduction <add>, %46, %cst_12 [1] : vector<8x128xf32> to vector<8xf32>
    %48 = vector.shape_cast %47 : vector<8xf32> to vector<8x1xf32>
    %49 = tpu.reciprocal %48 : vector<8x1xf32> -> vector<8x1xf32>
    %50 = vector.broadcast %49 : vector<8x1xf32> to vector<8x128xf32>
    %51 = arith.mulf %46, %50 : vector<8x128xf32>
    %c0_13 = arith.constant 0 : index
    %c0_14 = arith.constant 0 : index
    %52 = vector.load %arg2[%c0_13, %c0_14] : memref<8x128xf32, #tpu.memory_space<vmem>>, vector<8x128xf32>
    tpu.vector_store %arg2[%c0_13, %c0_14], %51 {strides = array<i32>} : memref<8x128xf32, #tpu.memory_space<vmem>>, vector<8x128xf32>,
    return
  }
}

</mosaic_0001>

<llo_original>
// kernel: forward.1
$region0: #{forward.1}
  #allocation0 [shape = 'u32[]', space=smem, size = 0x4, offset = 0x4, fixed_abs, tag = 'smem constant byte address 0x4 - core index']
  #allocation1 [shape = 'u32[144,128]{1,0:T(1,128)}', space=vmem, size = 0x12000, scoped, tag = 'internal scratch']
  %s0 = inlined_call_operand.vmem [shape: f32[8,4], index: 0, kind: input, shape index: {}]
  %s1 = inlined_call_operand.hbm [shape: f32[288,128], index: 1, kind: input, shape index: {}]
  %s2 = inlined_call_operand.vmem [shape: f32[8,128], index: 2, kind: output, shape index: {}]
  %s3 = sld [smem:[#allocation0]]
  $region22: #{forward.1} parent=0
    _
  %s5 = ssub.s32 1, %s3
  %s6 = scalar_select 0, %s5, %s3
  $region1: #{forward.1} parent=0
    #allocation2 [shape = 'u8[147456]{0}', space=vmem, size = 0x24000, scoped, tag = 'input window, operand 1, single buffered']
    #allocation3 [shape = 's32[1]{0}', space=sflag, size = 0x4, scoped, tag = 'scoped memory for forward.1']
    %7 = vsyncpa [#allocation3], 0
    // Predicated region
    $region2: #{forward.1} parent=1 // pred_check
      _
    $region3: #{forward.1} parent=1 // pred_check_branch
      %9 = sbr.rel (0) target = $region5
    $region4: #{forward.1} parent=1 // pred_region
      _
    $region5: #{forward.1} parent=1 // pred_fallthru
      _
    // Predicated region
    $region6: #{forward.1} parent=1 // pred_check
      _
    $region7: #{forward.1} parent=1 // pred_check_branch
      %11 = sbr.rel (0) target = $region9
    $region8: #{forward.1} parent=1 // pred_region
      %s13 = ssub.s32 4608, 4608
      %14 = vsyncadd [#allocation3], %s13
      %s15 = sshll.u32 [#allocation2], 4
      %s16 = int_to_ptr.vmem [resolvable:$true] %s15
      %21 = dma.hbm_to_vmem [thread:$0]  %s1, 4608, %s16, [#allocation3], 128, 128, 8
    $region9: #{forward.1} parent=1 // pred_fallthru
      _
    // Predicated region
    $region10: #{forward.1} parent=1 // pred_check
      _
    $region11: #{forward.1} parent=1 // pred_check_branch
      %23 = sbr.rel (0) target = $region13
    $region12: #{forward.1} parent=1 // pred_region
      %24 = dma.done [#allocation3], 4608
    $region13: #{forward.1} parent=1 // pred_fallthru
      _
    %v25 = vld [vmem:[%s0] sm:$0xff]
    %v26 = vld [vmem:[#allocation2] sm:$0xf]
    %28 = vset.pattern.permute.xlu0 0
    %29 = vperm.xlu0 %28, %v25
    %v30 = vpop.permute.xlu0 %29
    %v32 = vlaneseq
    %v33 = vshrl.u32 %v32, 7
    %v34 = vsub.s32 0, %v33
    %v35 = vrot.slane %v26, %v34
    %v36 = vmul.f32 %v30, %v35
    %v37 = vld [vmem:[#allocation2 + $0x8] sm:$0x1]
    %v38 = vlaneseq
    %v39 = vshrl.u32 %v38, 7
    %v40 = vsub.s32 0, %v39
    %v41 = vrot.slane %v37, %v40
    %v42 = vadd.f32 %v36, %v41
    %43 = vset.pattern.permute.xlu0 1
    %44 = vperm.xlu0 %43, %v25
    %v45 = vpop.permute.xlu0 %44
    %v47 = vlaneseq
    %v48 = vshrl.u32 %v47, 7
    %v49 = vsub.s32 1, %v48
    %v50 = vrot.slane %v26, %v49
    %v51 = vmul.f32 %v45, %v50
    %v52 = vadd.f32 %v42, %v51
    %53 = vset.pattern.permute.xlu0 2
    %54 = vperm.xlu0 %53, %v25
    %v55 = vpop.permute.xlu0 %54
    %v57 = vlaneseq
    %v58 = vshrl.u32 %v57, 7
    %v59 = vsub.s32 2, %v58
    %v60 = vrot.slane %v26, %v59
    %v61 = vmul.f32 %v55, %v60
    %v62 = vadd.f32 %v52, %v61
    %63 = vset.pattern.permute.xlu0 3
    %64 = vperm.xlu0 %63, %v25
    %v65 = vpop.permute.xlu0 %64
    %v67 = vlaneseq
    %v68 = vshrl.u32 %v67, 7
    %v69 = vsub.s32 3, %v68
    %v70 = vrot.slane %v26, %v69
    %v71 = vmul.f32 %v65, %v70
    %v72 = vadd.f32 %v62, %v71
    %v73 = vmax.f32 %v72, 0.0
    %v74 = vld [vmem:[#allocation2 + $0x10] sm:$0xff]
    %v75 = vld [vmem:[#allocation2 + $0x18] sm:$0xff]
    %v76 = vld [vmem:[#allocation2 + $0x20] sm:$0xff]
    %v77 = vld [vmem:[#allocation2 + $0x28] sm:$0xff]
    %v78 = vld [vmem:[#allocation2 + $0x30] sm:$0xff]
    %v79 = vld [vmem:[#allocation2 + $0x38] sm:$0xff]
    %v80 = vld [vmem:[#allocation2 + $0x40] sm:$0xff]
    %v81 = vld [vmem:[#allocation2 + $0x48] sm:$0xff]
    %v82 = vld [vmem:[#allocation2 + $0x50] sm:$0xff]
    %v83 = vld [vmem:[#allocation2 + $0x58] sm:$0xff]
    %v84 = vld [vmem:[#allocation2 + $0x60] sm:$0xff]
    %v85 = vld [vmem:[#allocation2 + $0x68] sm:$0xff]
    %v86 = vld [vmem:[#allocation2 + $0x70] sm:$0xff]
    %v87 = vld [vmem:[#allocation2 + $0x78] sm:$0xff]
    %v88 = vld [vmem:[#allocation2 + $0x80] sm:$0xff]
    %v89 = vld [vmem:[#allocation2 + $0x88] sm:$0xff]
    %v90 = vld [vmem:[#allocation2 + $0x90] sm:$0x1]
    %v91 = vlaneseq
    %v92 = vshrl.u32 %v91, 7
    %v93 = vsub.s32 0, %v92
    %v94 = vrot.slane %v90, %v93
    %95 = vmatprep.subr.mxu0 0.0
    %96 = vmatpush1.msra.mxu0 %v74
    %97 = vmatprep.subr.mxu0 0.0
    %98 = vmatpush1.msra.mxu0 %v75
    %99 = vmatprep.subr.mxu0 0.0
    %100 = vmatpush1.msra.mxu0 %v76
    %101 = vmatprep.subr.mxu0 0.0
    %102 = vmatpush1.msra.mxu0 %v77
    %103 = vmatprep.subr.mxu0 0.0
    %104 = vmatpush1.msra.mxu0 %v78
    %105 = vmatprep.subr.mxu0 0.0
    %106 = vmatpush1.msra.mxu0 %v79
    %107 = vmatprep.subr.mxu0 0.0
    %108 = vmatpush1.msra.mxu0 %v80
    %109 = vmatprep.subr.mxu0 0.0
    %110 = vmatpush1.msra.mxu0 %v81
    %111 = vmatprep.subr.mxu0 0.0
    %112 = vmatpush1.msra.mxu0 %v82
    %113 = vmatprep.subr.mxu0 0.0
    %114 = vmatpush1.msra.mxu0 %v83
    %115 = vmatprep.subr.mxu0 0.0
    %116 = vmatpush1.msra.mxu0 %v84
    %117 = vmatprep.subr.mxu0 0.0
    %118 = vmatpush1.msra.mxu0 %v85
    %119 = vmatprep.subr.mxu0 0.0
    %120 = vmatpush1.msra.mxu0 %v86
    %121 = vmatprep.subr.mxu0 0.0
    %122 = vmatpush1.msra.mxu0 %v87
    %123 = vmatprep.subr.mxu0 0.0
    %124 = vmatpush1.msra.mxu0 %v88
    %125 = vmatprep.subr.mxu0 0.0
    %126 = vmatpush1.msra.mxu0 %v89
    %127 = vmatprep.subr.mxu0 0.0
    %128 = vmatpush1.msra.mxu0 0.0
    %129 = vmatprep.subr.mxu0 0.0
    %130 = vmatpush1.msra.mxu0 0.0
    %131 = vmatprep.subr.mxu0 0.0
    %132 = vmatpush1.msra.mxu0 0.0
    %133 = vmatprep.subr.mxu0 0.0
    %134 = vmatpush1.msra.mxu0 0.0
    %135 = vmatprep.subr.mxu0 0.0
    %136 = vmatpush1.msra.mxu0 0.0
    %137 = vmatprep.subr.mxu0 0.0
    %138 = vmatpush1.msra.mxu0 0.0
    %139 = vmatprep.subr.mxu0 0.0
    %140 = vmatpush1.msra.mxu0 0.0
    %141 = vmatprep.subr.mxu0 0.0
    %142 = vmatpush1.msra.mxu0 0.0
    %143 = vmatprep.subr.mxu0 0.0
    %144 = vmatpush1.msra.mxu0 0.0
    %145 = vmatprep.subr.mxu0 0.0
    %146 = vmatpush1.msra.mxu0 0.0
    %147 = vmatprep.subr.mxu0 0.0
    %148 = vmatpush1.msra.mxu0 0.0
    %149 = vmatprep.subr.mxu0 0.0
    %150 = vmatpush1.msra.mxu0 0.0
    %151 = vmatprep.subr.mxu0 0.0
    %152 = vmatpush1.msra.mxu0 0.0
    %153 = vmatprep.subr.mxu0 0.0
    %154 = vmatpush1.msra.mxu0 0.0
    %155 = vmatprep.subr.mxu0 0.0
    %156 = vmatpush1.msra.mxu0 0.0
    %157 = vmatprep.subr.mxu0 0.0
    %158 = vmatpush1.msra.mxu0 0.0
    %159 = vmatprep.mubr.f32.mxu0 0.0
    %160 = vmatmul.mubr.f32.gmra.mrb[0].mxu0 %v73
    %v161 = vpop.f32.mrb[0].mxu0
    %v162 = vadd.f32 %v94, %v161
    %v163 = vpop.f32.mrb[0].mxu0
    %164 = vdwg.mxu0
    %v165 = vmax.f32 %v162, 0.0
    %v166 = vld [vmem:[#allocation2 + $0x98] sm:$0xff]
    %v167 = vld [vmem:[#allocation2 + $0xa0] sm:$0xff]
    %v168 = vld [vmem:[#allocation2 + $0xa8] sm:$0xff]
    %v169 = vld [vmem:[#allocation2 + $0xb0] sm:$0xff]
    %v170 = vld [vmem:[#allocation2 + $0xb8] sm:$0xff]
    %v171 = vld [vmem:[#allocation2 + $0xc0] sm:$0xff]
    %v172 = vld [vmem:[#allocation2 + $0xc8] sm:$0xff]
    %v173 = vld [vmem:[#allocation2 + $0xd0] sm:$0xff]
    %v174 = vld [vmem:[#allocation2 + $0xd8] sm:$0xff]
    %v175 = vld [vmem:[#allocation2 + $0xe0] sm:$0xff]
    %v176 = vld [vmem:[#allocation2 + $0xe8] sm:$0xff]
    %v177 = vld [vmem:[#allocation2 + $0xf0] sm:$0xff]
    %v178 = vld [vmem:[#allocation2 + $0xf8] sm:$0xff]
    %v179 = vld [vmem:[#allocation2 + $0x100] sm:$0xff]
    %v180 = vld [vmem:[#allocation2 + $0x108] sm:$0xff]
    %v181 = vld [vmem:[#allocation2 + $0x110] sm:$0xff]
    %v182 = vld [vmem:[#allocation2 + $0x118] sm:$0x1]
    %v183 = vlaneseq
    %v184 = vshrl.u32 %v183, 7
    %v185 = vsub.s32 0, %v184
    %v186 = vrot.slane %v182, %v185
    %187 = vmatprep.subr.mxu0 0.0
    %188 = vmatpush1.msra.mxu0 %v166
    %189 = vmatprep.subr.mxu0 0.0
    %190 = vmatpush1.msra.mxu0 %v167
    %191 = vmatprep.subr.mxu0 0.0
    %192 = vmatpush1.msra.mxu0 %v168
    %193 = vmatprep.subr.mxu0 0.0
    %194 = vmatpush1.msra.mxu0 %v169
    %195 = vmatprep.subr.mxu0 0.0
    %196 = vmatpush1.msra.mxu0 %v170
    %197 = vmatprep.subr.mxu0 0.0
    %198 = vmatpush1.msra.mxu0 %v171
    %199 = vmatprep.subr.mxu0 0.0
    %200 = vmatpush1.msra.mxu0 %v172
    %201 = vmatprep.subr.mxu0 0.0
    %202 = vmatpush1.msra.mxu0 %v173
    %203 = vmatprep.subr.mxu0 0.0
    %204 = vmatpush1.msra.mxu0 %v174
    %205 = vmatprep.subr.mxu0 0.0
    %206 = vmatpush1.msra.mxu0 %v175
    %207 = vmatprep.subr.mxu0 0.0
    %208 = vmatpush1.msra.mxu0 %v176
    %209 = vmatprep.subr.mxu0 0.0
    %210 = vmatpush1.msra.mxu0 %v177
    %211 = vmatprep.subr.mxu0 0.0
    %212 = vmatpush1.msra.mxu0 %v178
    %213 = vmatprep.subr.mxu0 0.0
    %214 = vmatpush1.msra.mxu0 %v179
    %215 = vmatprep.subr.mxu0 0.0
    %216 = vmatpush1.msra.mxu0 %v180
    %217 = vmatprep.subr.mxu0 0.0
    %218 = vmatpush1.msra.mxu0 %v181
    %219 = vmatprep.subr.mxu0 0.0
    %220 = vmatpush1.msra.mxu0 0.0
    %221 = vmatprep.subr.mxu0 0.0
    %222 = vmatpush1.msra.mxu0 0.0
    %223 = vmatprep.subr.mxu0 0.0
    %224 = vmatpush1.msra.mxu0 0.0
    %225 = vmatprep.subr.mxu0 0.0
    %226 = vmatpush1.msra.mxu0 0.0
    %227 = vmatprep.subr.mxu0 0.0
    %228 = vmatpush1.msra.mxu0 0.0
    %229 = vmatprep.subr.mxu0 0.0
    %230 = vmatpush1.msra.mxu0 0.0
    %231 = vmatprep.subr.mxu0 0.0
    %232 = vmatpush1.msra.mxu0 0.0
    %233 = vmatprep.subr.mxu0 0.0
    %234 = vmatpush1.msra.mxu0 0.0
    %235 = vmatprep.subr.mxu0 0.0
    %236 = vmatpush1.msra.mxu0 0.0
    %237 = vmatprep.subr.mxu0 0.0
    %238 = vmatpush1.msra.mxu0 0.0
    %239 = vmatprep.subr.mxu0 0.0
    %240 = vmatpush1.msra.mxu0 0.0
    %241 = vmatprep.subr.mxu0 0.0
    %242 = vmatpush1.msra.mxu0 0.0
    %243 = vmatprep.subr.mxu0 0.0
    %244 = vmatpush1.msra.mxu0 0.0
    %245 = vmatprep.subr.mxu0 0.0
    %246 = vmatpush1.msra.mxu0 0.0
    %247 = vmatprep.subr.mxu0 0.0
    %248 = vmatpush1.msra.mxu0 0.0
    %249 = vmatprep.subr.mxu0 0.0
    %250 = vmatpush1.msra.mxu0 0.0
    %251 = vmatprep.mubr.f32.mxu0 0.0
    %252 = vmatmul.mubr.f32.gmra.mrb[0].mxu0 %v165
    %v253 = vpop.f32.mrb[0].mxu0
    %v254 = vadd.f32 %v186, %v253
    %v255 = vpop.f32.mrb[0].mxu0
    %256 = vdwg.mxu0
    %257 = vmax.xlane.f32.xlu0 %v254
    %v258 = vpop.xlane.xlu0 %257
    %v259 = vsub.f32 %v254, %v258
    %v260 = vmul.f32 %v259, 1.442695
    %v261 = vpow.pop %v260
    %262 = vadd.xlane.f32.xlu0 %v261
    %v263 = vpop.xlane.xlu0 %262
    %v264 = vrcp.pop %v263
    %v265 = vmul.f32 %v261, %v264
    %266 = vst [vmem:[%s2] sm:$0xff] %v265
    // Predicated region
    $region14: #{forward.1} parent=1 // pred_check
      _
    $region15: #{forward.1} parent=1 // pred_check_branch
      %268 = sbr.rel (0) target = $region17
    $region16: #{forward.1} parent=1 // pred_region
      _
    $region17: #{forward.1} parent=1 // pred_fallthru
      _
    // Predicated region
    $region18: #{forward.1} parent=1 // pred_check
      _
    $region19: #{forward.1} parent=1 // pred_check_branch
      %270 = sbr.rel (0) target = $region21
    $region20: #{forward.1} parent=1 // pred_region
      _
    $region21: #{forward.1} parent=1 // pred_fallthru
      _
    %271 = vsyncpa [#allocation3], 1

</llo_original>
